<compile_context>
chip_gen: v7x
topology: tpu7x:2x2x1
jax: 0.10.0
libtpu: 0.0.40
codegen_flags: <defaults>
</compile_context>

<pallas_src>
import jax
import jax.numpy as jnp
from jax import lax
from jax.experimental import pallas as pl
from jax.experimental.pallas import tpu as pltpu

# ---- static config (consistent with the module) ----
N = 2            # batch
CIN = 3          # conv in-channels (fixed by module)
COUT = 10        # conv out-channels (fixed by module)
H = W = 16       # input spatial
K = 3            # kernel size
STRIDE = 2
PAD = 1
HO = (H + 2 * PAD - K) // STRIDE + 1   # 8
WO = (W + 2 * PAD - K) // STRIDE + 1   # 8
HW = HO * WO                            # 64
M = N * HW                              # 128 rows in the conv-as-matmul
KKC = K * K * CIN                       # 27 real features (K dim padded to 128)
NUM_CLASSES = 3
BN_EPS = 1e-5
LANES = 128

# combined input-slab row layout ([TOTAL_ROWS, 128] f32, single DMA)
WC_ROW = 128        # conv weight block  [128, 128] (rows 0:KKC, lanes 0:COUT live)
WF_ROW = 256        # fc weight block    [128, 128] (rows 0:COUT, lanes 0:NUM_CLASSES live)
G_ROW = 384         # gamma              (lanes 0:COUT live), 8-aligned row
B_ROW = 392         # beta
BIAS_ROW = 400      # fc bias            (lanes 0:NUM_CLASSES live)
TOTAL_ROWS = 408    # multiple of 8


def debug_model_kernel(buf_ref, out_ref):
    patches = buf_ref[0:M, :]                       # [128, 128] (lanes >= KKC are 0)
    wc = buf_ref[WC_ROW:WC_ROW + LANES, :]          # [128, 128] (zero-padded conv W)
    wf = buf_ref[WF_ROW:WF_ROW + LANES, :]          # [128, 128] (zero-padded fc W^T)
    gamma = buf_ref[G_ROW:G_ROW + 1, :]             # [1, 128]
    beta = buf_ref[B_ROW:B_ROW + 1, :]              # [1, 128]
    bias = buf_ref[BIAS_ROW:BIAS_ROW + 1, :]        # [1, 128]

    # Conv as one full-tile MXU matmul (padded K rows / lanes are zero).
    y = jnp.dot(patches, wc, preferred_element_type=jnp.float32)   # [M, 128]

    # BatchNorm2d (training mode): two-pass batch stats over the M rows,
    # biased variance, affine folded into one FMA.  Padded lanes stay 0.
    mu = jnp.mean(y, axis=0, keepdims=True)                        # [1, 128]
    d = y - mu
    var = jnp.mean(d * d, axis=0, keepdims=True)                   # [1, 128]
    a = gamma * lax.rsqrt(var + BN_EPS)                            # EUP rsqrt
    y = jnp.maximum(d * a + beta, 0.0)                             # BN + ReLU

    # AdaptiveAvgPool2d((1,1)): per-sample mean over the HW rows (pool before fc;
    # the two commute, so the classifier matmul runs on N rows instead of M).
    pooled = jnp.mean(y.reshape(N, HW, LANES), axis=1)             # [N, 128]

    # Linear: lane-dense [N, 128] output tile (wrapper slices the real classes).
    out_ref[...] = jnp.dot(pooled, wf, preferred_element_type=jnp.float32) + bias


def pack_params(conv_w, gamma, beta, fc_w, fc_b):
    """Build the static parameter rows ONCE (hoisted out of the per-call path)."""
    # OIHW -> (kh, kw, cin, cout) -> [KKC, COUT], matching the im2col feature order.
    wc2d = jnp.transpose(conv_w, (2, 3, 1, 0)).reshape(KKC, COUT).astype(jnp.float32)
    block = jnp.zeros((TOTAL_ROWS - M, LANES), jnp.float32)
    block = block.at[WC_ROW - M:WC_ROW - M + KKC, 0:COUT].set(wc2d)
    block = block.at[WF_ROW - M:WF_ROW - M + COUT, 0:NUM_CLASSES].set(
        fc_w.T.astype(jnp.float32))
    block = block.at[G_ROW - M, 0:COUT].set(gamma.astype(jnp.float32))
    block = block.at[B_ROW - M, 0:COUT].set(beta.astype(jnp.float32))
    block = block.at[BIAS_ROW - M, 0:NUM_CLASSES].set(fc_b.astype(jnp.float32))
    return block


@jax.jit
def debug_model_pallas(x, param_block):
    """x: [N, CIN, H, W]; param_block: [TOTAL_ROWS - M, 128] from pack_params()."""
    # im2col with feature order (ky, kx, cin): NCHW -> NHWC, pad, 9 static slices.
    x_nhwc = jnp.transpose(x, (0, 2, 3, 1)).astype(jnp.float32)
    x_pad = jnp.pad(x_nhwc, ((0, 0), (PAD, PAD), (PAD, PAD), (0, 0)))
    taps = [x_pad[:, ky:ky + STRIDE * HO:STRIDE, kx:kx + STRIDE * WO:STRIDE, :]
            for ky in range(K) for kx in range(K)]              # each [N, HO, WO, CIN]
    patches = jnp.concatenate(taps, axis=-1).reshape(M, KKC)    # [M, 27]
    patches = jnp.pad(patches, ((0, 0), (0, LANES - KKC)))      # lane-pad -> [M, 128]

    # Single lane-dense input slab: per-call patches stacked on static params.
    buf = jnp.concatenate([patches, param_block], axis=0)       # [TOTAL_ROWS, 128]

    vmem = pl.BlockSpec(memory_space=pltpu.MemorySpace.VMEM)
    out = pl.pallas_call(
        debug_model_kernel,
        out_shape=jax.ShapeDtypeStruct((N, LANES), jnp.float32),
        in_specs=[vmem],
        out_specs=vmem,
    )(buf)
    # NOTE: no grid needed at this size; if batch ever scales, add a leading
    # "parallel" grid axis over samples to use both TensorCores on v7x.
    return out[:, :NUM_CLASSES]

# TODO(synk): BatchNorm running_mean/running_var buffer updates (training-mode side
# effect of the PyTorch module) are not reproduced; only the forward output is.


def debug_model_ref(x, conv_w, gamma, beta, fc_w, fc_b):
    """Pure-JAX reference matching PyTorch forward semantics (BN in training mode)."""
    y = lax.conv_general_dilated(
        x.astype(jnp.float32), conv_w.astype(jnp.float32),
        window_strides=(STRIDE, STRIDE), padding=((PAD, PAD), (PAD, PAD)),
        dimension_numbers=("NCHW", "OIHW", "NCHW"))             # [N, COUT, HO, WO]
    mu = jnp.mean(y, axis=(0, 2, 3), keepdims=True)
    var = jnp.mean((y - mu) ** 2, axis=(0, 2, 3), keepdims=True)
    y = (y - mu) * lax.rsqrt(var + BN_EPS)
    y = y * gamma.reshape(1, COUT, 1, 1) + beta.reshape(1, COUT, 1, 1)
    y = jnp.maximum(y, 0.0)
    pooled = jnp.mean(y, axis=(2, 3))                           # [N, COUT]
    return pooled @ fc_w.T.astype(jnp.float32) + fc_b.astype(jnp.float32)


if __name__ == "__main__":
    key = jax.random.PRNGKey(0)
    kx, kw, kg, kb, kfw, kfb = jax.random.split(key, 6)

    x = jax.random.normal(kx, (N, CIN, H, W), dtype=jnp.float32)
    conv_w = jax.random.normal(kw, (COUT, CIN, K, K), dtype=jnp.float32) * 0.2
    gamma = 1.0 + 0.1 * jax.random.normal(kg, (COUT,), dtype=jnp.float32)
    beta = 0.1 * jax.random.normal(kb, (COUT,), dtype=jnp.float32)
    fc_w = jax.random.normal(kfw, (NUM_CLASSES, COUT), dtype=jnp.float32) * 0.3
    fc_b = 0.1 * jax.random.normal(kfb, (NUM_CLASSES,), dtype=jnp.float32)

    # Parameter packing runs once (hoisted); only im2col + concat are per call.
    param_block = jax.block_until_ready(pack_params(conv_w, gamma, beta, fc_w, fc_b))

    out = debug_model_pallas(x, param_block)
    out = jax.block_until_ready(out)

    ref = debug_model_ref(x, conv_w, gamma, beta, fc_w, fc_b)
    assert out.shape == (N, NUM_CLASSES)
    assert jnp.allclose(out, ref, atol=1e-4, rtol=1e-4), (out, ref)

    print("KERNEL_OK")
</pallas_src>

<mosaic_0001>
module attributes {stable_mosaic.version = 11 : i64} {
  func.func @debug_model_kernel(%arg0: memref<408x128xf32, #tpu.memory_space<vmem>>, %arg1: memref<2x128xf32, #tpu.memory_space<vmem>>) attributes {dimension_semantics = [], scalar_prefetch = 0 : i64, scratch_operands = 0 : i64, tpu.core_type = #tpu.core_type<tc>} {
    %c0 = arith.constant 0 : index
    %c0_0 = arith.constant 0 : index
    %0 = vector.load %arg0[%c0, %c0_0] : memref<408x128xf32, #tpu.memory_space<vmem>>, vector<128x128xf32>
    %c128 = arith.constant 128 : index
    %c0_1 = arith.constant 0 : index
    %1 = vector.load %arg0[%c128, %c0_1] : memref<408x128xf32, #tpu.memory_space<vmem>>, vector<128x128xf32>
    %c256 = arith.constant 256 : index
    %c0_2 = arith.constant 0 : index
    %2 = vector.load %arg0[%c256, %c0_2] : memref<408x128xf32, #tpu.memory_space<vmem>>, vector<128x128xf32>
    %c384 = arith.constant 384 : index
    %c0_3 = arith.constant 0 : index
    %3 = vector.load %arg0[%c384, %c0_3] : memref<408x128xf32, #tpu.memory_space<vmem>>, vector<1x128xf32>
    %c392 = arith.constant 392 : index
    %c0_4 = arith.constant 0 : index
    %4 = vector.load %arg0[%c392, %c0_4] : memref<408x128xf32, #tpu.memory_space<vmem>>, vector<1x128xf32>
    %c400 = arith.constant 400 : index
    %c0_5 = arith.constant 0 : index
    %5 = vector.load %arg0[%c400, %c0_5] : memref<408x128xf32, #tpu.memory_space<vmem>>, vector<1x128xf32>
    %cst = arith.constant dense<0.000000e+00> : vector<128x128xf32>
    %6 = tpu.matmul %0, %1, %cst {dimension_numbers = #tpu.dot_dimension_numbers<[1], [0], [0], [1], [0, 0, 1, 1], [], []>} : vector<128x128xf32>, vector<128x128xf32>, vector<128x128xf32> -> vector<128x128xf32>
    %cst_6 = arith.constant dense<0.000000e+00> : vector<128xf32>
    %7 = vector.multi_reduction <add>, %6, %cst_6 [0] : vector<128x128xf32> to vector<128xf32>
    %8 = vector.shape_cast %7 : vector<128xf32> to vector<1x128xf32>
    %cst_7 = arith.constant 1.280000e+02 : f32
    %9 = vector.broadcast %cst_7 : f32 to vector<1x128xf32>
    %10 = arith.divf %8, %9 : vector<1x128xf32>
    %11 = vector.broadcast %10 : vector<1x128xf32> to vector<128x128xf32>
    %12 = arith.subf %6, %11 : vector<128x128xf32>
    %13 = arith.mulf %12, %12 : vector<128x128xf32>
    %cst_8 = arith.constant dense<0.000000e+00> : vector<128xf32>
    %14 = vector.multi_reduction <add>, %13, %cst_8 [0] : vector<128x128xf32> to vector<128xf32>
    %15 = vector.shape_cast %14 : vector<128xf32> to vector<1x128xf32>
    %cst_9 = arith.constant 1.280000e+02 : f32
    %16 = vector.broadcast %cst_9 : f32 to vector<1x128xf32>
    %17 = arith.divf %15, %16 : vector<1x128xf32>
    %cst_10 = arith.constant 9.99999974E-6 : f32
    %18 = vector.broadcast %cst_10 : f32 to vector<1x128xf32>
    %19 = arith.addf %17, %18 : vector<1x128xf32>
    %20 = math.rsqrt %19 : vector<1x128xf32>
    %21 = arith.mulf %3, %20 : vector<1x128xf32>
    %22 = vector.broadcast %21 : vector<1x128xf32> to vector<128x128xf32>
    %23 = arith.mulf %12, %22 : vector<128x128xf32>
    %24 = vector.broadcast %4 : vector<1x128xf32> to vector<128x128xf32>
    %25 = arith.addf %23, %24 : vector<128x128xf32>
    %cst_11 = arith.constant 0.000000e+00 : f32
    %26 = vector.broadcast %cst_11 : f32 to vector<128x128xf32>
    %27 = arith.maximumf %25, %26 : vector<128x128xf32>
    %28 = vector.shape_cast %27 : vector<128x128xf32> to vector<2x64x128xf32>
    %cst_12 = arith.constant dense<0.000000e+00> : vector<2x128xf32>
    %29 = vector.multi_reduction <add>, %28, %cst_12 [1] : vector<2x64x128xf32> to vector<2x128xf32>
    %cst_13 = arith.constant 6.400000e+01 : f32
    %30 = vector.broadcast %cst_13 : f32 to vector<2x128xf32>
    %31 = arith.divf %29, %30 : vector<2x128xf32>
    %cst_14 = arith.constant dense<0.000000e+00> : vector<2x128xf32>
    %32 = tpu.matmul %31, %2, %cst_14 {dimension_numbers = #tpu.dot_dimension_numbers<[1], [0], [0], [1], [0, 0, 1, 1], [], []>} : vector<2x128xf32>, vector<128x128xf32>, vector<2x128xf32> -> vector<2x128xf32>
    %33 = vector.broadcast %5 : vector<1x128xf32> to vector<2x128xf32>
    %34 = arith.addf %32, %33 : vector<2x128xf32>
    %c0_15 = arith.constant 0 : index
    %c0_16 = arith.constant 0 : index
    %35 = vector.load %arg1[%c0_15, %c0_16] : memref<2x128xf32, #tpu.memory_space<vmem>>, vector<2x128xf32>
    tpu.vector_store %arg1[%c0_15, %c0_16], %34 {strides = array<i32>} : memref<2x128xf32, #tpu.memory_space<vmem>>, vector<2x128xf32>,
    return
  }
}

</mosaic_0001>

<llo_original>
// kernel: debug_model_pallas.1
$region0: #{debug_model_pallas.1}
  #allocation0 [shape = 'u32[]', space=smem, size = 0x4, offset = 0x4, fixed_abs, tag = 'smem constant byte address 0x4 - core index']
  #allocation1 [shape = 'u32[144,128]{1,0:T(1,128)}', space=vmem, size = 0x12000, scoped, tag = 'internal scratch']
  %s0 = inlined_call_operand.vmem [shape: f32[408,128], index: 0, kind: input, shape index: {}]
  %s1 = inlined_call_operand.hbm [shape: f32[2,128], index: 1, kind: output, shape index: {}]
  %s2 = sld [smem:[#allocation0]]
  $region14: #{debug_model_pallas.1} parent=0
    _
  %s4 = ssub.s32 1, %s2
  %s5 = scalar_select 0, %s4, %s2
  $region1: #{debug_model_pallas.1} parent=0
    #allocation2 [shape = 'u8[1024]{0}', space=vmem, size = 0x400, scoped, tag = 'output window, operand 0, single buffered']
    #allocation3 [shape = 's32[1]{0}', space=sflag, size = 0x4, scoped, tag = 'scoped memory for debug_model_pallas.1']
    %6 = vsyncpa [#allocation3], 0
    // Predicated region
    $region2: #{debug_model_pallas.1} parent=1 // pred_check
      _
    $region3: #{debug_model_pallas.1} parent=1 // pred_check_branch
      %8 = sbr.rel (0) target = $region5
    $region4: #{debug_model_pallas.1} parent=1 // pred_region
      _
    $region5: #{debug_model_pallas.1} parent=1 // pred_fallthru
      _
    %v9 = vld [vmem:[%s0] sm:$0xff]
    %v10 = vld [vmem:[%s0 + $0x8] sm:$0xff]
    %v11 = vld [vmem:[%s0 + $0x10] sm:$0xff]
    %v12 = vld [vmem:[%s0 + $0x18] sm:$0xff]
    %v13 = vld [vmem:[%s0 + $0x20] sm:$0xff]
    %v14 = vld [vmem:[%s0 + $0x28] sm:$0xff]
    %v15 = vld [vmem:[%s0 + $0x30] sm:$0xff]
    %v16 = vld [vmem:[%s0 + $0x38] sm:$0xff]
    %v17 = vld [vmem:[%s0 + $0x40] sm:$0xff]
    %v18 = vld [vmem:[%s0 + $0x48] sm:$0xff]
    %v19 = vld [vmem:[%s0 + $0x50] sm:$0xff]
    %v20 = vld [vmem:[%s0 + $0x58] sm:$0xff]
    %v21 = vld [vmem:[%s0 + $0x60] sm:$0xff]
    %v22 = vld [vmem:[%s0 + $0x68] sm:$0xff]
    %v23 = vld [vmem:[%s0 + $0x70] sm:$0xff]
    %v24 = vld [vmem:[%s0 + $0x78] sm:$0xff]
    %v25 = vld [vmem:[%s0 + $0x80] sm:$0xff]
    %v26 = vld [vmem:[%s0 + $0x88] sm:$0xff]
    %v27 = vld [vmem:[%s0 + $0x90] sm:$0xff]
    %v28 = vld [vmem:[%s0 + $0x98] sm:$0xff]
    %v29 = vld [vmem:[%s0 + $0xa0] sm:$0xff]
    %v30 = vld [vmem:[%s0 + $0xa8] sm:$0xff]
    %v31 = vld [vmem:[%s0 + $0xb0] sm:$0xff]
    %v32 = vld [vmem:[%s0 + $0xb8] sm:$0xff]
    %v33 = vld [vmem:[%s0 + $0xc0] sm:$0xff]
    %v34 = vld [vmem:[%s0 + $0xc8] sm:$0xff]
    %v35 = vld [vmem:[%s0 + $0xd0] sm:$0xff]
    %v36 = vld [vmem:[%s0 + $0xd8] sm:$0xff]
    %v37 = vld [vmem:[%s0 + $0xe0] sm:$0xff]
    %v38 = vld [vmem:[%s0 + $0xe8] sm:$0xff]
    %v39 = vld [vmem:[%s0 + $0xf0] sm:$0xff]
    %v40 = vld [vmem:[%s0 + $0xf8] sm:$0xff]
    %v41 = vld [vmem:[%s0 + $0x100] sm:$0xff]
    %v42 = vld [vmem:[%s0 + $0x108] sm:$0xff]
    %v43 = vld [vmem:[%s0 + $0x110] sm:$0xff]
    %v44 = vld [vmem:[%s0 + $0x118] sm:$0xff]
    %v45 = vld [vmem:[%s0 + $0x120] sm:$0xff]
    %v46 = vld [vmem:[%s0 + $0x128] sm:$0xff]
    %v47 = vld [vmem:[%s0 + $0x130] sm:$0xff]
    %v48 = vld [vmem:[%s0 + $0x138] sm:$0xff]
    %v49 = vld [vmem:[%s0 + $0x140] sm:$0xff]
    %v50 = vld [vmem:[%s0 + $0x148] sm:$0xff]
    %v51 = vld [vmem:[%s0 + $0x150] sm:$0xff]
    %v52 = vld [vmem:[%s0 + $0x158] sm:$0xff]
    %v53 = vld [vmem:[%s0 + $0x160] sm:$0xff]
    %v54 = vld [vmem:[%s0 + $0x168] sm:$0xff]
    %v55 = vld [vmem:[%s0 + $0x170] sm:$0xff]
    %v56 = vld [vmem:[%s0 + $0x178] sm:$0xff]
    %v57 = vld [vmem:[%s0 + $0x180] sm:$0x1]
    %v58 = vld [vmem:[%s0 + $0x188] sm:$0x1]
    %v59 = vld [vmem:[%s0 + $0x190] sm:$0x1]
    %60 = vmatprep.subr.mxu0 0.0
    %61 = vmatpush1.msra.mxu0 %v25
    %62 = vmatprep.subr.mxu0 0.0
    %63 = vmatpush1.msra.mxu0 %v26
    %64 = vmatprep.subr.mxu0 0.0
    %65 = vmatpush1.msra.mxu0 %v27
    %66 = vmatprep.subr.mxu0 0.0
    %67 = vmatpush1.msra.mxu0 %v28
    %68 = vmatprep.subr.mxu0 0.0
    %69 = vmatpush1.msra.mxu0 %v29
    %70 = vmatprep.subr.mxu0 0.0
    %71 = vmatpush1.msra.mxu0 %v30
    %72 = vmatprep.subr.mxu0 0.0
    %73 = vmatpush1.msra.mxu0 %v31
    %74 = vmatprep.subr.mxu0 0.0
    %75 = vmatpush1.msra.mxu0 %v32
    %76 = vmatprep.subr.mxu0 0.0
    %77 = vmatpush1.msra.mxu0 %v33
    %78 = vmatprep.subr.mxu0 0.0
    %79 = vmatpush1.msra.mxu0 %v34
    %80 = vmatprep.subr.mxu0 0.0
    %81 = vmatpush1.msra.mxu0 %v35
    %82 = vmatprep.subr.mxu0 0.0
    %83 = vmatpush1.msra.mxu0 %v36
    %84 = vmatprep.subr.mxu0 0.0
    %85 = vmatpush1.msra.mxu0 %v37
    %86 = vmatprep.subr.mxu0 0.0
    %87 = vmatpush1.msra.mxu0 %v38
    %88 = vmatprep.subr.mxu0 0.0
    %89 = vmatpush1.msra.mxu0 %v39
    %90 = vmatprep.subr.mxu0 0.0
    %91 = vmatpush1.msra.mxu0 %v40
    %92 = vmatprep.subr.mxu0 0.0
    %93 = vmatpush1.msra.mxu0 0.0
    %94 = vmatprep.subr.mxu0 0.0
    %95 = vmatpush1.msra.mxu0 0.0
    %96 = vmatprep.subr.mxu0 0.0
    %97 = vmatpush1.msra.mxu0 0.0
    %98 = vmatprep.subr.mxu0 0.0
    %99 = vmatpush1.msra.mxu0 0.0
    %100 = vmatprep.subr.mxu0 0.0
    %101 = vmatpush1.msra.mxu0 0.0
    %102 = vmatprep.subr.mxu0 0.0
    %103 = vmatpush1.msra.mxu0 0.0
    %104 = vmatprep.subr.mxu0 0.0
    %105 = vmatpush1.msra.mxu0 0.0
    %106 = vmatprep.subr.mxu0 0.0
    %107 = vmatpush1.msra.mxu0 0.0
    %108 = vmatprep.subr.mxu0 0.0
    %109 = vmatpush1.msra.mxu0 0.0
    %110 = vmatprep.subr.mxu0 0.0
    %111 = vmatpush1.msra.mxu0 0.0
    %112 = vmatprep.subr.mxu0 0.0
    %113 = vmatpush1.msra.mxu0 0.0
    %114 = vmatprep.subr.mxu0 0.0
    %115 = vmatpush1.msra.mxu0 0.0
    %116 = vmatprep.subr.mxu0 0.0
    %117 = vmatpush1.msra.mxu0 0.0
    %118 = vmatprep.subr.mxu0 0.0
    %119 = vmatpush1.msra.mxu0 0.0
    %120 = vmatprep.subr.mxu0 0.0
    %121 = vmatpush1.msra.mxu0 0.0
    %122 = vmatprep.subr.mxu0 0.0
    %123 = vmatpush1.msra.mxu0 0.0
    %124 = vmatprep.mubr.f32.mxu0 0.0
    %125 = vmatmul.mubr.f32.gmra.mrb[0].mxu0 %v9
    %v126 = vpop.f32.mrb[0].mxu0
    %v127 = vadd.f32 0.0, %v126
    %v128 = vpop.f32.mrb[0].mxu0
    %129 = vmatprep.mubr.f32.mxu0 0.0
    %130 = vmatmul.mubr.f32.gmra.mrb[0].mxu0 %v10
    %v131 = vpop.f32.mrb[0].mxu0
    %v132 = vadd.f32 0.0, %v131
    %v133 = vpop.f32.mrb[0].mxu0
    %134 = vmatprep.mubr.f32.mxu0 0.0
    %135 = vmatmul.mubr.f32.gmra.mrb[0].mxu0 %v11
    %v136 = vpop.f32.mrb[0].mxu0
    %v137 = vadd.f32 0.0, %v136
    %v138 = vpop.f32.mrb[0].mxu0
    %139 = vmatprep.mubr.f32.mxu0 0.0
    %140 = vmatmul.mubr.f32.gmra.mrb[0].mxu0 %v12
    %v141 = vpop.f32.mrb[0].mxu0
    %v142 = vadd.f32 0.0, %v141
    %v143 = vpop.f32.mrb[0].mxu0
    %144 = vmatprep.mubr.f32.mxu0 0.0
    %145 = vmatmul.mubr.f32.gmra.mrb[0].mxu0 %v13
    %v146 = vpop.f32.mrb[0].mxu0
    %v147 = vadd.f32 0.0, %v146
    %v148 = vpop.f32.mrb[0].mxu0
    %149 = vmatprep.mubr.f32.mxu0 0.0
    %150 = vmatmul.mubr.f32.gmra.mrb[0].mxu0 %v14
    %v151 = vpop.f32.mrb[0].mxu0
    %v152 = vadd.f32 0.0, %v151
    %v153 = vpop.f32.mrb[0].mxu0
    %154 = vmatprep.mubr.f32.mxu0 0.0
    %155 = vmatmul.mubr.f32.gmra.mrb[0].mxu0 %v15
    %v156 = vpop.f32.mrb[0].mxu0
    %v157 = vadd.f32 0.0, %v156
    %v158 = vpop.f32.mrb[0].mxu0
    %159 = vmatprep.mubr.f32.mxu0 0.0
    %160 = vmatmul.mubr.f32.gmra.mrb[0].mxu0 %v16
    %v161 = vpop.f32.mrb[0].mxu0
    %v162 = vadd.f32 0.0, %v161
    %v163 = vpop.f32.mrb[0].mxu0
    %164 = vmatprep.mubr.f32.mxu0 0.0
    %165 = vmatmul.mubr.f32.gmra.mrb[0].mxu0 %v17
    %v166 = vpop.f32.mrb[0].mxu0
    %v167 = vadd.f32 0.0, %v166
    %v168 = vpop.f32.mrb[0].mxu0
    %169 = vmatprep.mubr.f32.mxu0 0.0
    %170 = vmatmul.mubr.f32.gmra.mrb[0].mxu0 %v18
    %v171 = vpop.f32.mrb[0].mxu0
    %v172 = vadd.f32 0.0, %v171
    %v173 = vpop.f32.mrb[0].mxu0
    %174 = vmatprep.mubr.f32.mxu0 0.0
    %175 = vmatmul.mubr.f32.gmra.mrb[0].mxu0 %v19
    %v176 = vpop.f32.mrb[0].mxu0
    %v177 = vadd.f32 0.0, %v176
    %v178 = vpop.f32.mrb[0].mxu0
    %179 = vmatprep.mubr.f32.mxu0 0.0
    %180 = vmatmul.mubr.f32.gmra.mrb[0].mxu0 %v20
    %v181 = vpop.f32.mrb[0].mxu0
    %v182 = vadd.f32 0.0, %v181
    %v183 = vpop.f32.mrb[0].mxu0
    %184 = vmatprep.mubr.f32.mxu0 0.0
    %185 = vmatmul.mubr.f32.gmra.mrb[0].mxu0 %v21
    %v186 = vpop.f32.mrb[0].mxu0
    %v187 = vadd.f32 0.0, %v186
    %v188 = vpop.f32.mrb[0].mxu0
    %189 = vmatprep.mubr.f32.mxu0 0.0
    %190 = vmatmul.mubr.f32.gmra.mrb[0].mxu0 %v22
    %v191 = vpop.f32.mrb[0].mxu0
    %v192 = vadd.f32 0.0, %v191
    %v193 = vpop.f32.mrb[0].mxu0
    %194 = vmatprep.mubr.f32.mxu0 0.0
    %195 = vmatmul.mubr.f32.gmra.mrb[0].mxu0 %v23
    %v196 = vpop.f32.mrb[0].mxu0
    %v197 = vadd.f32 0.0, %v196
    %v198 = vpop.f32.mrb[0].mxu0
    %199 = vmatprep.mubr.f32.mxu0 0.0
    %200 = vmatmul.mubr.f32.gmra.mrb[0].mxu0 %v24
    %v201 = vpop.f32.mrb[0].mxu0
    %v202 = vadd.f32 0.0, %v201
    %v203 = vpop.f32.mrb[0].mxu0
    %204 = vdwg.mxu0
    %v205 = vadd.f32 %v127, %v132
    %v206 = vadd.f32 %v205, %v137
    %v207 = vadd.f32 %v206, %v142
    %v208 = vadd.f32 %v207, %v147
    %v209 = vadd.f32 %v208, %v152
    %v210 = vadd.f32 %v209, %v157
    %v211 = vadd.f32 %v210, %v162
    %v212 = vadd.f32 %v211, %v167
    %v213 = vadd.f32 %v212, %v172
    %v214 = vadd.f32 %v213, %v177
    %v215 = vadd.f32 %v214, %v182
    %v216 = vadd.f32 %v215, %v187
    %v217 = vadd.f32 %v216, %v192
    %v218 = vadd.f32 %v217, %v197
    %v219 = vadd.f32 %v218, %v202
    %v220 = vrot.slane %v219, 4
    %v221 = vadd.f32 %v219, %v220
    %v222 = vrot.slane %v221, 2
    %v223 = vadd.f32 %v221, %v222
    %v224 = vrot.slane %v223, 1
    %v225 = vadd.f32 %v223, %v224
    %v226 = vrcp.pop 128.0
    %v227 = vmul.f32 %v225, %v226
    %v228 = vsub.f32 %v127, %v227
    %v229 = vsub.f32 %v132, %v227
    %v230 = vsub.f32 %v137, %v227
    %v231 = vsub.f32 %v142, %v227
    %v232 = vsub.f32 %v147, %v227
    %v233 = vsub.f32 %v152, %v227
    %v234 = vsub.f32 %v157, %v227
    %v235 = vsub.f32 %v162, %v227
    %v236 = vsub.f32 %v167, %v227
    %v237 = vsub.f32 %v172, %v227
    %v238 = vsub.f32 %v177, %v227
    %v239 = vsub.f32 %v182, %v227
    %v240 = vsub.f32 %v187, %v227
    %v241 = vsub.f32 %v192, %v227
    %v242 = vsub.f32 %v197, %v227
    %v243 = vsub.f32 %v202, %v227
    %v244 = vmul.f32 %v228, %v228
    %v245 = vmul.f32 %v229, %v229
    %v246 = vmul.f32 %v230, %v230
    %v247 = vmul.f32 %v231, %v231
    %v248 = vmul.f32 %v232, %v232
    %v249 = vmul.f32 %v233, %v233
    %v250 = vmul.f32 %v234, %v234
    %v251 = vmul.f32 %v235, %v235
    %v252 = vmul.f32 %v236, %v236
    %v253 = vmul.f32 %v237, %v237
    %v254 = vmul.f32 %v238, %v238
    %v255 = vmul.f32 %v239, %v239
    %v256 = vmul.f32 %v240, %v240
    %v257 = vmul.f32 %v241, %v241
    %v258 = vmul.f32 %v242, %v242
    %v259 = vmul.f32 %v243, %v243
    %v260 = vadd.f32 %v244, %v245
    %v261 = vadd.f32 %v260, %v246
    %v262 = vadd.f32 %v261, %v247
    %v263 = vadd.f32 %v262, %v248
    %v264 = vadd.f32 %v263, %v249
    %v265 = vadd.f32 %v264, %v250
    %v266 = vadd.f32 %v265, %v251
    %v267 = vadd.f32 %v266, %v252
    %v268 = vadd.f32 %v267, %v253
    %v269 = vadd.f32 %v268, %v254
    %v270 = vadd.f32 %v269, %v255
    %v271 = vadd.f32 %v270, %v256
    %v272 = vadd.f32 %v271, %v257
    %v273 = vadd.f32 %v272, %v258
    %v274 = vadd.f32 %v273, %v259
    %v275 = vrot.slane %v274, 4
    %v276 = vadd.f32 %v274, %v275
    %v277 = vrot.slane %v276, 2
    %v278 = vadd.f32 %v276, %v277
    %v279 = vrot.slane %v278, 1
    %v280 = vadd.f32 %v278, %v279
    %v281 = vmul.f32 %v280, %v226
    %v282 = vadd.f32 %v281, 1e-05
    %v283 = vrsqrt.pop %v282
    %v284 = vmul.f32 %v57, %v283
    %v285 = vlaneseq
    %v286 = vshrl.u32 %v285, 7
    %v287 = vsub.s32 0, %v286
    %v288 = vrot.slane %v284, %v287
    %v289 = vmul.f32 %v228, %v288
    %v290 = vmul.f32 %v229, %v288
    %v291 = vmul.f32 %v230, %v288
    %v292 = vmul.f32 %v231, %v288
    %v293 = vmul.f32 %v232, %v288
    %v294 = vmul.f32 %v233, %v288
    %v295 = vmul.f32 %v234, %v288
    %v296 = vmul.f32 %v235, %v288
    %v297 = vmul.f32 %v236, %v288
    %v298 = vmul.f32 %v237, %v288
    %v299 = vmul.f32 %v238, %v288
    %v300 = vmul.f32 %v239, %v288
    %v301 = vmul.f32 %v240, %v288
    %v302 = vmul.f32 %v241, %v288
    %v303 = vmul.f32 %v242, %v288
    %v304 = vmul.f32 %v243, %v288
    %v305 = vlaneseq
    %v306 = vshrl.u32 %v305, 7
    %v307 = vsub.s32 0, %v306
    %v308 = vrot.slane %v58, %v307
    %v309 = vadd.f32 %v289, %v308
    %v310 = vadd.f32 %v290, %v308
    %v311 = vadd.f32 %v291, %v308
    %v312 = vadd.f32 %v292, %v308
    %v313 = vadd.f32 %v293, %v308
    %v314 = vadd.f32 %v294, %v308
    %v315 = vadd.f32 %v295, %v308
    %v316 = vadd.f32 %v296, %v308
    %v317 = vadd.f32 %v297, %v308
    %v318 = vadd.f32 %v298, %v308
    %v319 = vadd.f32 %v299, %v308
    %v320 = vadd.f32 %v300, %v308
    %v321 = vadd.f32 %v301, %v308
    %v322 = vadd.f32 %v302, %v308
    %v323 = vadd.f32 %v303, %v308
    %v324 = vadd.f32 %v304, %v308
    %v325 = vmax.f32 %v309, 0.0
    %v326 = vmax.f32 %v310, 0.0
    %v327 = vmax.f32 %v311, 0.0
    %v328 = vmax.f32 %v312, 0.0
    %v329 = vmax.f32 %v313, 0.0
    %v330 = vmax.f32 %v314, 0.0
    %v331 = vmax.f32 %v315, 0.0
    %v332 = vmax.f32 %v316, 0.0
    %v333 = vmax.f32 %v317, 0.0
    %v334 = vmax.f32 %v318, 0.0
    %v335 = vmax.f32 %v319, 0.0
    %v336 = vmax.f32 %v320, 0.0
    %v337 = vmax.f32 %v321, 0.0
    %v338 = vmax.f32 %v322, 0.0
    %v339 = vmax.f32 %v323, 0.0
    %v340 = vmax.f32 %v324, 0.0
    %v341 = vadd.f32 %v325, %v326
    %v342 = vadd.f32 %v341, %v327
    %v343 = vadd.f32 %v342, %v328
    %v344 = vadd.f32 %v343, %v329
    %v345 = vadd.f32 %v344, %v330
    %v346 = vadd.f32 %v345, %v331
    %v347 = vadd.f32 %v346, %v332
    %v348 = vrot.slane %v347, 4
    %v349 = vadd.f32 %v347, %v348
    %v350 = vrot.slane %v349, 2
    %v351 = vadd.f32 %v349, %v350
    %v352 = vrot.slane %v351, 1
    %v353 = vadd.f32 %v351, %v352
    %v354 = vadd.f32 %v333, %v334
    %v355 = vadd.f32 %v354, %v335
    %v356 = vadd.f32 %v355, %v336
    %v357 = vadd.f32 %v356, %v337
    %v358 = vadd.f32 %v357, %v338
    %v359 = vadd.f32 %v358, %v339
    %v360 = vadd.f32 %v359, %v340
    %v361 = vrot.slane %v360, 4
    %v362 = vadd.f32 %v360, %v361
    %v363 = vrot.slane %v362, 2
    %v364 = vadd.f32 %v362, %v363
    %v365 = vrot.slane %v364, 1
    %v366 = vadd.f32 %v364, %v365
    %v367 = vrcp.pop 64.0
    %v368 = vmul.f32 %v353, %v367
    %v369 = vmul.f32 %v366, %v367
    %v370 = vlaneseq
    %v371 = vshrl.u32 %v370, 7
    %v372 = vsub.s32 0, %v371
    %v373 = vrot.slane %v59, %v372
    %vm376 = vcmask 1041409
    %v377 = vsel %vm376, %v369, %v368
    %379 = vmatprep.subr.mxu0 0.0
    %380 = vmatpush1.msra.mxu0 %v41
    %381 = vmatprep.subr.mxu0 0.0
    %382 = vmatpush1.msra.mxu0 %v42
    %383 = vmatprep.subr.mxu0 0.0
    %384 = vmatpush1.msra.mxu0 %v43
    %385 = vmatprep.subr.mxu0 0.0
    %386 = vmatpush1.msra.mxu0 %v44
    %387 = vmatprep.subr.mxu0 0.0
    %388 = vmatpush1.msra.mxu0 %v45
    %389 = vmatprep.subr.mxu0 0.0
    %390 = vmatpush1.msra.mxu0 %v46
    %391 = vmatprep.subr.mxu0 0.0
    %392 = vmatpush1.msra.mxu0 %v47
    %393 = vmatprep.subr.mxu0 0.0
    %394 = vmatpush1.msra.mxu0 %v48
    %395 = vmatprep.subr.mxu0 0.0
    %396 = vmatpush1.msra.mxu0 %v49
    %397 = vmatprep.subr.mxu0 0.0
    %398 = vmatpush1.msra.mxu0 %v50
    %399 = vmatprep.subr.mxu0 0.0
    %400 = vmatpush1.msra.mxu0 %v51
    %401 = vmatprep.subr.mxu0 0.0
    %402 = vmatpush1.msra.mxu0 %v52
    %403 = vmatprep.subr.mxu0 0.0
    %404 = vmatpush1.msra.mxu0 %v53
    %405 = vmatprep.subr.mxu0 0.0
    %406 = vmatpush1.msra.mxu0 %v54
    %407 = vmatprep.subr.mxu0 0.0
    %408 = vmatpush1.msra.mxu0 %v55
    %409 = vmatprep.subr.mxu0 0.0
    %410 = vmatpush1.msra.mxu0 %v56
    %411 = vmatprep.subr.mxu0 0.0
    %412 = vmatpush1.msra.mxu0 0.0
    %413 = vmatprep.subr.mxu0 0.0
    %414 = vmatpush1.msra.mxu0 0.0
    %415 = vmatprep.subr.mxu0 0.0
    %416 = vmatpush1.msra.mxu0 0.0
    %417 = vmatprep.subr.mxu0 0.0
    %418 = vmatpush1.msra.mxu0 0.0
    %419 = vmatprep.subr.mxu0 0.0
    %420 = vmatpush1.msra.mxu0 0.0
    %421 = vmatprep.subr.mxu0 0.0
    %422 = vmatpush1.msra.mxu0 0.0
    %423 = vmatprep.subr.mxu0 0.0
    %424 = vmatpush1.msra.mxu0 0.0
    %425 = vmatprep.subr.mxu0 0.0
    %426 = vmatpush1.msra.mxu0 0.0
    %427 = vmatprep.subr.mxu0 0.0
    %428 = vmatpush1.msra.mxu0 0.0
    %429 = vmatprep.subr.mxu0 0.0
    %430 = vmatpush1.msra.mxu0 0.0
    %431 = vmatprep.subr.mxu0 0.0
    %432 = vmatpush1.msra.mxu0 0.0
    %433 = vmatprep.subr.mxu0 0.0
    %434 = vmatpush1.msra.mxu0 0.0
    %435 = vmatprep.subr.mxu0 0.0
    %436 = vmatpush1.msra.mxu0 0.0
    %437 = vmatprep.subr.mxu0 0.0
    %438 = vmatpush1.msra.mxu0 0.0
    %439 = vmatprep.subr.mxu0 0.0
    %440 = vmatpush1.msra.mxu0 0.0
    %441 = vmatprep.subr.mxu0 0.0
    %442 = vmatpush1.msra.mxu0 0.0
    %443 = vmatprep.mubr.f32.mxu0 0.0
    %444 = vmatmul.mubr.f32.gmra.mrb[0].mxu0 %v377
    %v445 = vpop.f32.mrb[0].mxu0
    %v446 = vadd.f32 %v373, %v445
    %v447 = vpop.f32.mrb[0].mxu0
    %448 = vdwg.mxu0
    %449 = vst [vmem:[#allocation2] sm:$0x3] %v446
    // Predicated region
    $region6: #{debug_model_pallas.1} parent=1 // pred_check
      _
    $region7: #{debug_model_pallas.1} parent=1 // pred_check_branch
      %451 = sbr.rel (0) target = $region9
    $region8: #{debug_model_pallas.1} parent=1 // pred_region
      %s453 = ssub.s32 32, 32
      %454 = vsyncadd [#allocation3], %s453
      %s456 = sshll.u32 [#allocation2], 4
      %s457 = int_to_ptr.vmem [resolvable:$true] %s456
      %459 = dma.vmem_to_hbm [thread:$0]  %s457, 32, %s1, [#allocation3]
    $region9: #{debug_model_pallas.1} parent=1 // pred_fallthru
      _
    // Predicated region
    $region10: #{debug_model_pallas.1} parent=1 // pred_check
      _
    $region11: #{debug_model_pallas.1} parent=1 // pred_check_branch
      %461 = sbr.rel (0) target = $region13
    $region12: #{debug_model_pallas.1} parent=1 // pred_region
      %462 = dma.done [#allocation3], 32
    $region13: #{debug_model_pallas.1} parent=1 // pred_fallthru
      _
    %463 = vsyncpa [#allocation3], 1

</llo_original>
